<compile_context>
chip_gen: v7x
topology: tpu7x:2x2x1
jax: 0.10.0
libtpu: 0.0.40
codegen_flags: <defaults>
</compile_context>

<pallas_src>
import jax
import jax.numpy as jnp
from jax.experimental import pallas as pl
from jax.experimental.pallas import tpu as pltpu


def _round_up(v, m):
    return ((v + m - 1) // m) * m


def _patch_embed_kernel(pt_ref, w_ref, b_ref, o_ref):
    # pt_ref: (1, K, TL)   compute-dtype patch columns (patch index on lanes)
    # w_ref : (TN, K)      compute-dtype projection weight tile (resident)
    # b_ref : (TN, 1)      f32 bias tile (resident)
    # o_ref : (1, TN, TL)  output tile, already in the NC(HW) orientation
    acc = jnp.dot(w_ref[...], pt_ref[0], preferred_element_type=jnp.float32)
    o_ref[0] = (acc + b_ref[...]).astype(o_ref.dtype)


def patch_embed_pallas(x, weight, bias, patch_size, *,
                       out_dtype=jnp.bfloat16,
                       compute_dtype=jnp.bfloat16,
                       tl=None, tn=1024,
                       vmem_cap_bytes=20 * 1024 * 1024):
    """x: (B, C, H, W). weight: (embed_dim, C, p, p). bias: (embed_dim,).

    Returns (B, embed_dim, H//p, W//p) -- identical semantics to the PyTorch
    PatchEmbed forward (norm_layer=None), up to the chosen compute/out dtypes.
    """
    B, C, H, W = x.shape
    p = patch_size
    assert H % p == 0 and W % p == 0, "image size must be divisible by patch size"
    Hp, Wp = H // p, W // p
    L = Hp * Wp
    N = weight.shape[0]          # embed_dim
    K = C * p * p

    cdt = jnp.dtype(compute_dtype)
    odt = jnp.dtype(out_dtype)
    c_item = cdt.itemsize
    out_item = odt.itemsize

    # --- Single fused relayout pass: NCHW -> (B, K, L) transposed patches. ---
    # (B, C, Hp, p, Wp, p) -> (B, C, p, p, Hp, Wp) -> (B, K, L); the dtype cast
    # fuses into the same XLA transpose, so this is one read(x.dtype) +
    # write(compute_dtype) of the input.  K flatten order (c, kh, kw) matches
    # Conv2d's OIHW weight.reshape(N, K).
    pt = x.reshape(B, C, Hp, p, Wp, p)
    pt = jnp.transpose(pt, (0, 1, 3, 5, 2, 4)).reshape(B, K, L).astype(cdt)

    w_nk = weight.reshape(N, K).astype(cdt)            # (N, K)
    b_n1 = bias.astype(jnp.float32).reshape(N, 1)      # (N, 1)

    # --- Tile sizes (sublane/lane aligned; no input padding needed). -------
    # embed_dim tile: full N unless N is very large (keeps resident weight and
    # the f32 accumulator bounded on v7x's 64 MiB VMEM).
    TN = N if N <= tn else max(8, (tn // 8) * 8)

    def _step_bytes(tl_):
        return (2 * K * tl_ * c_item          # patch tile (double buffered)
                + 2 * TN * K * c_item         # resident weight buffers
                + 2 * TN * 4                  # resident bias buffers
                + 2 * TN * tl_ * out_item     # output tile (double buffered)
                + TN * tl_ * 4)               # f32 matmul intermediate

    if tl is not None:
        TL = L if _round_up(tl, 128) >= L else max(128, _round_up(tl, 128))
    elif _step_bytes(L) <= vmem_cap_bytes:
        TL = L                                 # full-L blocks: fewest grid steps
        # Give v7x's two TensorCores something to split when B == 1.
        if B == 1 and L >= 256:
            TL = _round_up(pl.cdiv(L, 2), 128)
    else:
        TL = _round_up(L, 128)
        while TL > 128 and _step_bytes(TL) > vmem_cap_bytes:
            TL = max(128, _round_up(TL // 2, 128))

    grid = (pl.cdiv(N, TN), B, pl.cdiv(L, TL))

    vmem_limit = int(1.5 * _step_bytes(TL)) + (2 << 20)
    vmem_limit = max(32 * 1024 * 1024, min(64 * 1024 * 1024, vmem_limit))

    cost = pl.CostEstimate(
        flops=2 * B * L * K * N,
        transcendentals=0,
        bytes_accessed=(B * K * L * c_item       # patches (read once)
                        + N * K * c_item         # weight
                        + N * 4                  # bias
                        + B * N * L * out_item), # output writeback
    )

    out_bnl = pl.pallas_call(
        _patch_embed_kernel,
        out_shape=jax.ShapeDtypeStruct((B, N, L), odt),
        grid=grid,
        in_specs=[
            pl.BlockSpec((1, K, TL), lambda n, b, t: (b, 0, t)),   # streamed patches
            pl.BlockSpec((TN, K), lambda n, b, t: (n, 0)),         # resident weight
            pl.BlockSpec((TN, 1), lambda n, b, t: (n, 0)),         # resident bias
        ],
        out_specs=pl.BlockSpec((1, TN, TL), lambda n, b, t: (b, n, t)),
        compiler_params=pltpu.CompilerParams(
            dimension_semantics=("parallel", "parallel", "parallel"),
            vmem_limit_bytes=vmem_limit,
        ),
        cost_estimate=cost,
    )(pt, w_nk, b_n1)

    # (B, N, L) -> (B, N, Hp, Wp): pure metadata reshape, no HBM pass.
    return out_bnl.reshape(B, N, Hp, Wp)


def _reference_conv(x, weight, bias, patch_size):
    y = jax.lax.conv_general_dilated(
        x, weight,
        window_strides=(patch_size, patch_size),
        padding="VALID",
        dimension_numbers=("NCHW", "OIHW", "NCHW"),
    )
    return y + bias.reshape(1, -1, 1, 1)


if __name__ == "__main__":
    # Small shapes consistent with the module: img_size=16, patch_size=4,
    # in_chans=4, embed_dim=32, batch=2 (norm_layer=None -> no norm).
    B, C, H, W = 2, 4, 16, 16
    patch_size = 4
    embed_dim = 32

    key = jax.random.PRNGKey(0)
    kx, kw, kb = jax.random.split(key, 3)
    x = jax.random.normal(kx, (B, C, H, W), dtype=jnp.float32)
    fan_in = C * patch_size * patch_size
    weight = jax.random.normal(kw, (embed_dim, C, patch_size, patch_size),
                               dtype=jnp.float32) * (1.0 / fan_in ** 0.5)
    bias = jax.random.normal(kb, (embed_dim,), dtype=jnp.float32) * 0.01

    # Default (bf16 writeback) and f32-output variants.
    out_bf = jax.block_until_ready(patch_embed_pallas(x, weight, bias, patch_size))
    out_f32 = jax.block_until_ready(
        patch_embed_pallas(x, weight, bias, patch_size, out_dtype=jnp.float32))

    Hp, Wp = H // patch_size, W // patch_size
    assert out_bf.shape == (B, embed_dim, Hp, Wp), out_bf.shape
    assert out_bf.dtype == jnp.bfloat16
    assert out_f32.shape == (B, embed_dim, Hp, Wp), out_f32.shape
    assert out_f32.dtype == jnp.float32

    # Reference with bf16-rounded operands (kernel uses bf16 MXU inputs with
    # f32 accumulation) -> tight tolerance for the f32-output path, bf16
    # output-rounding tolerance for the default path.
    x_bf = x.astype(jnp.bfloat16).astype(jnp.float32)
    w_bf = weight.astype(jnp.bfloat16).astype(jnp.float32)
    ref_bf = _reference_conv(x_bf, w_bf, bias, patch_size)
    assert jnp.allclose(out_f32, ref_bf, atol=5e-4, rtol=5e-4), float(
        jnp.max(jnp.abs(out_f32 - ref_bf)))
    assert jnp.allclose(out_bf.astype(jnp.float32), ref_bf, atol=3e-2, rtol=3e-2), float(
        jnp.max(jnp.abs(out_bf.astype(jnp.float32) - ref_bf)))

    # Sanity check against the full-f32 reference with bf16-level tolerance.
    ref_f32 = _reference_conv(x, weight, bias, patch_size)
    assert jnp.allclose(out_f32, ref_f32, atol=5e-2, rtol=5e-2), float(
        jnp.max(jnp.abs(out_f32 - ref_f32)))

    print("KERNEL_OK")
</pallas_src>

<mosaic_0001>
module attributes {stable_mosaic.version = 11 : i64} {
  func.func @_patch_embed_kernel(%arg0: i32, %arg1: i32, %arg2: i32, %arg3: memref<1x64x16xbf16, #tpu.memory_space<vmem>>, %arg4: memref<32x64xbf16, #tpu.memory_space<vmem>>, %arg5: memref<32x1xf32, #tpu.memory_space<vmem>>, %arg6: memref<1x32x16xbf16, #tpu.memory_space<vmem>>) attributes {dimension_semantics = [#tpu.dimension_semantics<parallel>, #tpu.dimension_semantics<parallel>, #tpu.dimension_semantics<parallel>], iteration_bounds = array<i64: 1, 2, 1>, scalar_prefetch = 0 : i64, scratch_operands = 0 : i64, tpu.core_type = #tpu.core_type<tc>, window_params = [{transform_indices = @transform_0, window_bounds = array<i64: 1, 64, 16>}, {transform_indices = @transform_1, window_bounds = array<i64: 32, 64>}, {transform_indices = @transform_2, window_bounds = array<i64: 32, 1>}, {transform_indices = @transform_3, window_bounds = array<i64: 1, 32, 16>}]} {
    %c0 = arith.constant 0 : index
    %c0_0 = arith.constant 0 : index
    %0 = vector.load %arg4[%c0, %c0_0] : memref<32x64xbf16, #tpu.memory_space<vmem>>, vector<32x64xbf16>
    %c0_1 = arith.constant 0 : index
    %c0_2 = arith.constant 0 : index
    %c0_3 = arith.constant 0 : index
    %1 = vector.load %arg3[%c0_1, %c0_2, %c0_3] : memref<1x64x16xbf16, #tpu.memory_space<vmem>>, vector<1x64x16xbf16>
    %2 = vector.shape_cast %1 : vector<1x64x16xbf16> to vector<64x16xbf16>
    %cst = arith.constant dense<0.000000e+00> : vector<32x16xf32>
    %3 = tpu.matmul %0, %2, %cst {dimension_numbers = #tpu.dot_dimension_numbers<[1], [0], [0], [1], [0, 0, 1, 1], [], []>} : vector<32x64xbf16>, vector<64x16xbf16>, vector<32x16xf32> -> vector<32x16xf32>
    %c0_4 = arith.constant 0 : index
    %c0_5 = arith.constant 0 : index
    %4 = vector.load %arg5[%c0_4, %c0_5] : memref<32x1xf32, #tpu.memory_space<vmem>>, vector<32x1xf32>
    %5 = vector.broadcast %4 : vector<32x1xf32> to vector<32x16xf32>
    %6 = arith.addf %3, %5 : vector<32x16xf32>
    %7 = arith.truncf %6 : vector<32x16xf32> to vector<32x16xbf16>
    %c0_6 = arith.constant 0 : index
    %c0_7 = arith.constant 0 : index
    %c0_8 = arith.constant 0 : index
    %8 = vector.load %arg6[%c0_6, %c0_7, %c0_8] : memref<1x32x16xbf16, #tpu.memory_space<vmem>>, vector<1x32x16xbf16>
    %9 = vector.shape_cast %8 : vector<1x32x16xbf16> to vector<32x16xbf16>
    %10 = vector.shape_cast %7 : vector<32x16xbf16> to vector<1x32x16xbf16>
    tpu.vector_store %arg6[%c0_6, %c0_7, %c0_8], %10 {strides = array<i32>} : memref<1x32x16xbf16, #tpu.memory_space<vmem>>, vector<1x32x16xbf16>,
    return
  }
  func.func @transform_0(%arg0: i32, %arg1: i32, %arg2: i32) -> (i32, i32, i32) {
    %c0_i32 = arith.constant 0 : i32
    %c0_i32_0 = arith.constant 0 : i32
    return %arg1, %c0_i32, %arg2 : i32, i32, i32
  }
  func.func @transform_1(%arg0: i32, %arg1: i32, %arg2: i32) -> (i32, i32) {
    %c0_i32 = arith.constant 0 : i32
    %c0_i32_0 = arith.constant 0 : i32
    return %arg0, %c0_i32 : i32, i32
  }
  func.func @transform_2(%arg0: i32, %arg1: i32, %arg2: i32) -> (i32, i32) {
    %c0_i32 = arith.constant 0 : i32
    %c0_i32_0 = arith.constant 0 : i32
    return %arg0, %c0_i32 : i32, i32
  }
  func.func @transform_3(%arg0: i32, %arg1: i32, %arg2: i32) -> (i32, i32, i32) {
    %c0_i32 = arith.constant 0 : i32
    return %arg1, %arg0, %arg2 : i32, i32, i32
  }
}

</mosaic_0001>

<llo_original>
// kernel: tpu_custom_call.1
$region0: #{tpu_custom_call.1}
  #allocation0 [shape = 'u32[]', space=smem, size = 0x4, offset = 0x4, fixed_abs, tag = 'smem constant byte address 0x4 - core index']
  #allocation1 [shape = 'u32[144,128]{1,0:T(1,128)}', space=vmem, size = 0x12000, scoped, tag = 'internal scratch']
  %s0 = inlined_call_operand.vmem [shape: bf16[2,64,16], index: 0, kind: input, shape index: {}]
  %s1 = inlined_call_operand.vmem [shape: bf16[32,64], index: 1, kind: input, shape index: {}]
  %s2 = inlined_call_operand.vmem [shape: f32[32,1], index: 2, kind: input, shape index: {}]
  %s3 = inlined_call_operand.vmem [shape: bf16[2,32,16], index: 3, kind: output, shape index: {}]
  %s4 = sld [smem:[#allocation0]]
  $region45: #{tpu_custom_call.1} parent=0
    _
  %s6 = ssub.s32 1, %s4
  %s7 = scalar_select 0, %s6, %s4
  loop: start=0, step=1, limit=4
  $region2: #{tpu_custom_call.1} parent=0 // loop_pre_header
    _
  $region3: #{tpu_custom_call.1} parent=0 // loop_header
    %s9 = sphi 0, %s13
    %p10 = scmp.ge.s32.totalorder %s9, 4
    %s16 = sphi 0, %s35
    %s17 = sphi 0, %s31
    %s18 = sphi 0, %s27
    %s19 = sphi 0, %s16
    %s20 = sphi 0, %s17
    %s21 = sphi 0, %s18
    %s22 = sphi 0, %s19
    %s23 = sphi 0, %s20
    %s24 = sphi 0, %s21
    %s40 = sphi 0, %s42
    %s43 = sphi 0, %s40
    %s44 = sphi 0, %s43
    %s60 = sphi 0, %s44
    %s66 = sphi 0, %s68
    %s69 = sphi 0, %s66
    %s70 = sphi 0, %s69
    %s86 = sphi 0, %s70
    %s92 = sphi 0, %s94
    %s95 = sphi 0, %s92
    %s96 = sphi 0, %s95
    %s112 = sphi 0, %s96
    %s122 = sphi 0, %s124
    %s125 = sphi 0, %s122
    %s126 = sphi 0, %s125
    %s142 = sphi 0, %s126
  $region4: #{tpu_custom_call.1} parent=0 // loop_header_branch
    %12 = sbr.rel (%p10) target = $region8
  $region5: #{tpu_custom_call.1} parent=0 // loop_body
    %s14 = ssub.s32 %s9, 1
    %s15 = ssub.s32 %s9, 2
    %s25 = sadd.s32 1, %s18
    %p26 = scmp.ge.s32.totalorder %s25, 1
    %s27 = scalar_select %p26, 0, %s25
    %s28 = sadd.s32 1, %s17
    %s29 = scalar_select %p26, %s28, %s17
    %p30 = scmp.ge.s32.totalorder %s29, 2
    %s31 = scalar_select %p30, 0, %s29
    %s32 = sadd.s32 1, %s16
    %s33 = scalar_select %p30, %s32, %s16
    %p34 = scmp.ge.s32.totalorder %s33, 1
    %s35 = scalar_select %p34, 0, %s33
    %s36 = ssub.s32 %s17, %s31
    %s37 = ssub.s32 %s18, %s27
    %s38 = sor.u32 %s36, %s37
    %p39 = scmp.eq.s32.totalorder %s38, 0
    %s41 = sadd.s32 %s40, 1
    %s42 = scalar_select %p39, %s40, %s41
    %p45 = pneg %p39
    %p46 = scmp.eq.s32.totalorder %s9, 1
    %p47 = por %p45, %p46
    %p48 = scmp.ne.s32.totalorder %s40, %s43
    %p49 = scmp.eq.s32.totalorder %s9, 0
    %p50 = por %p48, %p49
    %p51 = scmp.ne.s32.totalorder %s40, %s43
    %p52 = scmp.eq.s32.totalorder %s14, 1
    %p53 = por %p51, %p52
    %p54 = scmp.ne.s32.totalorder %s43, %s44
    %p55 = scmp.eq.s32.totalorder %s14, 0
    %p56 = por %p54, %p55
    %p57 = scmp.ne.s32.totalorder %s43, %s44
    %p58 = scmp.eq.s32.totalorder %s15, 1
    %p59 = por %p57, %p58
    %p61 = scmp.ne.s32.totalorder %s44, %s60
    %p62 = scmp.eq.s32.totalorder %s15, 0
    %p63 = por %p61, %p62
    %s64 = ssub.s32 %s16, %s35
    %p65 = scmp.eq.s32.totalorder %s64, 0
    %s67 = sadd.s32 %s66, 1
    %s68 = scalar_select %p65, %s66, %s67
    %p71 = pneg %p65
    %p72 = scmp.eq.s32.totalorder %s9, 1
    %p73 = por %p71, %p72
    %p74 = scmp.ne.s32.totalorder %s66, %s69
    %p75 = scmp.eq.s32.totalorder %s9, 0
    %p76 = por %p74, %p75
    %p77 = scmp.ne.s32.totalorder %s66, %s69
    %p78 = scmp.eq.s32.totalorder %s14, 1
    %p79 = por %p77, %p78
    %p80 = scmp.ne.s32.totalorder %s69, %s70
    %p81 = scmp.eq.s32.totalorder %s14, 0
    %p82 = por %p80, %p81
    %p83 = scmp.ne.s32.totalorder %s69, %s70
    %p84 = scmp.eq.s32.totalorder %s15, 1
    %p85 = por %p83, %p84
    %p87 = scmp.ne.s32.totalorder %s70, %s86
    %p88 = scmp.eq.s32.totalorder %s15, 0
    %p89 = por %p87, %p88
    %s90 = ssub.s32 %s16, %s35
    %p91 = scmp.eq.s32.totalorder %s90, 0
    %s93 = sadd.s32 %s92, 1
    %s94 = scalar_select %p91, %s92, %s93
    %p97 = pneg %p91
    %p98 = scmp.eq.s32.totalorder %s9, 1
    %p99 = por %p97, %p98
    %p100 = scmp.ne.s32.totalorder %s92, %s95
    %p101 = scmp.eq.s32.totalorder %s9, 0
    %p102 = por %p100, %p101
    %p103 = scmp.ne.s32.totalorder %s92, %s95
    %p104 = scmp.eq.s32.totalorder %s14, 1
    %p105 = por %p103, %p104
    %p106 = scmp.ne.s32.totalorder %s95, %s96
    %p107 = scmp.eq.s32.totalorder %s14, 0
    %p108 = por %p106, %p107
    %p109 = scmp.ne.s32.totalorder %s95, %s96
    %p110 = scmp.eq.s32.totalorder %s15, 1
    %p111 = por %p109, %p110
    %p113 = scmp.ne.s32.totalorder %s96, %s112
    %p114 = scmp.eq.s32.totalorder %s15, 0
    %p115 = por %p113, %p114
    %s116 = ssub.s32 %s17, %s31
    %s117 = ssub.s32 %s16, %s35
    %s118 = sor.u32 %s116, %s117
    %s119 = ssub.s32 %s18, %s27
    %s120 = sor.u32 %s118, %s119
    %p121 = scmp.eq.s32.totalorder %s120, 0
    %s123 = sadd.s32 %s122, 1
    %s124 = scalar_select %p121, %s122, %s123
    %p127 = pneg %p121
    %p128 = scmp.eq.s32.totalorder %s9, 1
    %p129 = por %p127, %p128
    %p130 = scmp.ne.s32.totalorder %s122, %s125
    %p131 = scmp.eq.s32.totalorder %s9, 0
    %p132 = por %p130, %p131
    %p133 = scmp.ne.s32.totalorder %s122, %s125
    %p134 = scmp.eq.s32.totalorder %s14, 1
    %p135 = por %p133, %p134
    %p136 = scmp.ne.s32.totalorder %s125, %s126
    %p137 = scmp.eq.s32.totalorder %s14, 0
    %p138 = por %p136, %p137
    %p139 = scmp.ne.s32.totalorder %s125, %s126
    %p140 = scmp.eq.s32.totalorder %s15, 1
    %p141 = por %p139, %p140
    %p143 = scmp.ne.s32.totalorder %s126, %s142
    %p144 = scmp.eq.s32.totalorder %s15, 0
    %p145 = por %p143, %p144
    %p146 = scmp.le.s32.totalorder 1, %s9
    %p147 = scmp.lt.s32.totalorder %s9, 3
    %p148 = pnand %p146, %p147
    %p149 = pneg %p148
    // Predicated region
    $region9: #{tpu_custom_call.1} parent=5 // pred_check
      _
    $region10: #{tpu_custom_call.1} parent=5 // pred_check_branch
      %151 = sbr.rel (%p148) target = $region12
    $region11: #{tpu_custom_call.1} parent=5 // pred_region
      %s152 = ssub.s32 %s9, 1
      // Predicated region
      $region13: #{tpu_custom_call.1} parent=11 // pred_check
        %p153 = pneg %p82
      $region14: #{tpu_custom_call.1} parent=11 // pred_check_branch
        %155 = sbr.rel (%p153) target = $region16
      $region15: #{tpu_custom_call.1} parent=11 // pred_region
        %s156 = smul.u32 4, %s19
        %p157 = scmp.lt.s32.totalorder %s156, 3
        %s158 = scalar_select %p157, %s156, 3
        %s159 = smul.addr %s158, 4
        %s160 = scalar_lea.vmem %s1, %s159
        %s161 = smul.u32 4, %s19
      $region16: #{tpu_custom_call.1} parent=11 // pred_fallthru
        _
      // Predicated region
      $region17: #{tpu_custom_call.1} parent=11 // pred_check
        %p162 = pneg %p108
      $region18: #{tpu_custom_call.1} parent=11 // pred_check_branch
        %164 = sbr.rel (%p162) target = $region20
      $region19: #{tpu_custom_call.1} parent=11 // pred_region
        %s165 = smul.u32 4, %s19
        %p166 = scmp.lt.s32.totalorder %s165, 3
        %s167 = scalar_select %p166, %s165, 3
        %s168 = smul.addr %s167, 8
        %s169 = scalar_lea.vmem %s2, %s168
        %s170 = smul.u32 4, %s19
      $region20: #{tpu_custom_call.1} parent=11 // pred_fallthru
        _
    $region12: #{tpu_custom_call.1} parent=5 // pred_fallthru
      _
    %p171 = scmp.lt.s32.totalorder %s9, 2
    // Predicated region
    $region21: #{tpu_custom_call.1} parent=5 // pred_check
      %p172 = pneg %p171
    $region22: #{tpu_custom_call.1} parent=5 // pred_check_branch
      %174 = sbr.rel (%p172) target = $region24
    $region23: #{tpu_custom_call.1} parent=5 // pred_region
      // Predicated region
      $region25: #{tpu_custom_call.1} parent=23 // pred_check
        %p175 = pneg %p50
      $region26: #{tpu_custom_call.1} parent=23 // pred_check_branch
        %177 = sbr.rel (%p175) target = $region28
      $region27: #{tpu_custom_call.1} parent=23 // pred_region
        %p178 = scmp.lt.s32.totalorder %s17, 1
        %s179 = scalar_select %p178, %s17, 1
        %p180 = scmp.lt.s32.totalorder %s18, 0
        %s181 = scalar_select %p180, %s18, 0
        %s182 = smul.addr %s179, 8
        %s183 = sadd.s32 %s181, %s182
        %s184 = smul.addr %s183, 4
        %s185 = scalar_lea.vmem %s0, %s184
      $region28: #{tpu_custom_call.1} parent=23 // pred_fallthru
        _
    $region24: #{tpu_custom_call.1} parent=5 // pred_fallthru
      _
    %p186 = scmp.le.s32.totalorder 1, %s9
    %p187 = scmp.lt.s32.totalorder %s9, 3
    %p188 = pnand %p186, %p187
    %p189 = pneg %p188
    // Predicated region
    $region29: #{tpu_custom_call.1} parent=5 // pred_check
      _
    $region30: #{tpu_custom_call.1} parent=5 // pred_check_branch
      %191 = sbr.rel (%p188) target = $region32
    $region31: #{tpu_custom_call.1} parent=5 // pred_region
      %s192 = ssub.s32 %s9, 1
      %p193 = scmp.lt.s32.totalorder %s20, 1
      %s194 = scalar_select %p193, %s20, 1
      %p195 = scmp.lt.s32.totalorder %s21, 0
      %s196 = scalar_select %p195, %s21, 0
      %s197 = smul.addr %s194, 8
      %s198 = sadd.s32 %s196, %s197
      %s199 = smul.addr %s198, 4
      %s200 = scalar_lea.vmem %s0, %s199
      %p201 = pneg %p56
      %p202 = pneg %p53
      %s203 = smul.u32 4, %s19
      %p204 = scmp.lt.s32.totalorder %s203, 3
      %s205 = scalar_select %p204, %s203, 3
      %s206 = smul.addr %s205, 4
      %s207 = scalar_lea.vmem %s1, %s206
      %p208 = pneg %p82
      %p209 = pneg %p79
      %s210 = smul.u32 4, %s19
      %p211 = scmp.lt.s32.totalorder %s210, 3
      %s212 = scalar_select %p211, %s210, 3
      %s213 = smul.addr %s212, 8
      %s214 = scalar_lea.vmem %s2, %s213
      %p215 = pneg %p108
      %p216 = pneg %p105
      %p217 = pneg %p138
      %p218 = pneg %p135
      %s219 = smul.u32 4, %s19
      %p220 = scmp.lt.s32.totalorder %s20, 1
      %s221 = scalar_select %p220, %s20, 1
      %p222 = scmp.lt.s32.totalorder %s219, 3
      %s223 = scalar_select %p222, %s219, 3
      %p224 = scmp.lt.s32.totalorder %s21, 0
      %s225 = scalar_select %p224, %s21, 0
      %s226 = sadd.s32 %s225, %s223
      %s227 = smul.addr %s221, 4
      %s228 = sadd.s32 %s226, %s227
      %s229 = smul.addr %s228, 4
      %s230 = scalar_lea.vmem %s3, %s229
      %p231 = scmp.lt.s32.totalorder %s20, 1
      %s232 = scalar_select %p231, %s20, 1
      %p233 = scmp.lt.s32.totalorder %s21, 0
      %s234 = scalar_select %p233, %s21, 0
      %s235 = smul.addr %s232, 8
      %s236 = sadd.s32 %s234, %s235
      %s237 = smul.addr %s236, 4
      %s238 = scalar_lea.vmem %s0, %s237
      %s239 = smul.u32 4, %s19
      %p240 = scmp.lt.s32.totalorder %s239, 3
      %s241 = scalar_select %p240, %s239, 3
      %s242 = smul.addr %s241, 4
      %s243 = scalar_lea.vmem %s1, %s242
      %s244 = smul.u32 4, %s19
      %s245 = smul.u32 4, %s19
      %p246 = scmp.lt.s32.totalorder %s245, 3
      %s247 = scalar_select %p246, %s245, 3
      %s248 = smul.addr %s247, 8
      %s249 = scalar_lea.vmem %s2, %s248
      %s250 = smul.u32 4, %s19
      %s251 = smul.u32 4, %s19
      %p252 = scmp.lt.s32.totalorder %s20, 1
      %s253 = scalar_select %p252, %s20, 1
      %p254 = scmp.lt.s32.totalorder %s251, 3
      %s255 = scalar_select %p254, %s251, 3
      %p256 = scmp.lt.s32.totalorder %s21, 0
      %s257 = scalar_select %p256, %s21, 0
      %s258 = sadd.s32 %s257, %s255
      %s259 = smul.addr %s253, 4
      %s260 = sadd.s32 %s258, %s259
      %s261 = smul.addr %s260, 4
      %s262 = scalar_lea.vmem %s3, %s261
      %s263 = smul.u32 4, %s19
      %v265 = vld [vmem:[%s243] sm:$0xf]
      %v266 = vld [vmem:[%s243 + $0x4] sm:$0xf]
      %v267 = vld [vmem:[%s243 + $0x8] sm:$0xf]
      %v268 = vld [vmem:[%s243 + $0xc] sm:$0xf]
      %v269 = vld [vmem:[%s238] sm:$0xf]
      %v270 = vld [vmem:[%s238 + $0x4] sm:$0xf]
      %v271 = vld [vmem:[%s238 + $0x8] sm:$0xf]
      %v272 = vld [vmem:[%s238 + $0xc] sm:$0xf]
      %v273 = vld [vmem:[%s238 + $0x10] sm:$0xf]
      %v274 = vld [vmem:[%s238 + $0x14] sm:$0xf]
      %v275 = vld [vmem:[%s238 + $0x18] sm:$0xf]
      %v276 = vld [vmem:[%s238 + $0x1c] sm:$0xf]
      %v277 = vld [vmem:[%s249] sm:$0xff]
      %v278 = vld [vmem:[%s249 + $0x8] sm:$0xff]
      %v279 = vld [vmem:[%s249 + $0x10] sm:$0xff]
      %v280 = vld [vmem:[%s249 + $0x18] sm:$0xff]
      %282 = vset.pattern.permute.xlu0 0
      %283 = vperm.xlu0 %282, %v277
      %v284 = vpop.permute.xlu0 %283
      %287 = vset.pattern.permute.xlu0 0
      %288 = vperm.xlu0 %287, %v278
      %v289 = vpop.permute.xlu0 %288
      %292 = vset.pattern.permute.xlu0 0
      %293 = vperm.xlu0 %292, %v279
      %v294 = vpop.permute.xlu0 %293
      %297 = vset.pattern.permute.xlu0 0
      %298 = vperm.xlu0 %297, %v280
      %v299 = vpop.permute.xlu0 %298
      %v305 = vunpack.c.l.b16 %v265
      %v306 = vunpack.c.l.b16 %v266
      %v307 = vunpack.c.l.b16 %v267
      %v308 = vunpack.c.l.b16 %v268
      %v309 = vpack.c.b16 %v306, %v305
      %v310 = vpack.c.b16 %v308, %v307
      %v319 = vunpack.c.l.b16 %v269
      %v320 = vunpack.c.l.b16 %v270
      %v321 = vunpack.c.l.b16 %v271
      %v322 = vunpack.c.l.b16 %v272
      %v323 = vunpack.c.l.b16 %v273
      %v324 = vunpack.c.l.b16 %v274
      %v325 = vunpack.c.l.b16 %v275
      %v326 = vunpack.c.l.b16 %v276
      %v327 = vpack.c.b16 %v320, %v319
      %v328 = vpack.c.b16 %v322, %v321
      %v329 = vpack.c.b16 %v324, %v323
      %v330 = vpack.c.b16 %v326, %v325
      %vm335 = vcmask 523264
      %v337 = vsel %vm335, %v309, 0
      %v340 = vsel %vm335, %v310, 0
      %342 = vmatprep.subr.bf16.mxu0 0
      %343 = vmatpush1.bf16.msra.mxu0 %v327
      %344 = vmatprep.subr.bf16.mxu0 0
      %345 = vmatpush1.bf16.msra.mxu0 %v328
      %346 = vmatprep.subr.bf16.mxu0 0
      %347 = vmatpush1.bf16.msra.mxu0 %v329
      %348 = vmatprep.subr.bf16.mxu0 0
      %349 = vmatpush1.bf16.msra.mxu0 %v330
      %350 = vmatprep.subr.bf16.mxu0 0
      %351 = vmatpush1.bf16.msra.mxu0 0
      %352 = vmatprep.subr.bf16.mxu0 0
      %353 = vmatpush1.bf16.msra.mxu0 0
      %354 = vmatprep.subr.bf16.mxu0 0
      %355 = vmatpush1.bf16.msra.mxu0 0
      %356 = vmatprep.subr.bf16.mxu0 0
      %357 = vmatpush1.bf16.msra.mxu0 0
      %358 = vmatprep.subr.bf16.mxu0 0
      %359 = vmatpush1.bf16.msra.mxu0 0
      %360 = vmatprep.subr.bf16.mxu0 0
      %361 = vmatpush1.bf16.msra.mxu0 0
      %362 = vmatprep.subr.bf16.mxu0 0
      %363 = vmatpush1.bf16.msra.mxu0 0
      %364 = vmatprep.subr.bf16.mxu0 0
      %365 = vmatpush1.bf16.msra.mxu0 0
      %366 = vmatprep.subr.bf16.mxu0 0
      %367 = vmatpush1.bf16.msra.mxu0 0
      %368 = vmatprep.subr.bf16.mxu0 0
      %369 = vmatpush1.bf16.msra.mxu0 0
      %370 = vmatprep.subr.bf16.mxu0 0
      %371 = vmatpush1.bf16.msra.mxu0 0
      %372 = vmatprep.subr.bf16.mxu0 0
      %373 = vmatpush1.bf16.msra.mxu0 0
      %374 = vmatprep.mubr.bf16.mxu0 0
      %375 = vmatmul.mubr.bf16.gmra.mrb[0].mxu0 %v337
      %v376 = vpop.f32.mrb[0].mxu0
      %v377 = vadd.f32 %v284, %v376
      %v378 = vpop.f32.mrb[0].mxu0
      %v379 = vpop.f32.mrb[0].mxu0
      %v380 = vadd.f32 %v289, %v379
      %v381 = vpop.f32.mrb[0].mxu0
      %382 = vmatprep.mubr.bf16.mxu0 0
      %383 = vmatmul.mubr.bf16.gmra.mrb[0].mxu0 %v340
      %v384 = vpop.f32.mrb[0].mxu0
      %v385 = vadd.f32 %v294, %v384
      %v386 = vpop.f32.mrb[0].mxu0
      %v387 = vpop.f32.mrb[0].mxu0
      %v388 = vadd.f32 %v299, %v387
      %v389 = vpop.f32.mrb[0].mxu0
      %390 = vdwg.mxu0
      %v391 = vpack.c.bf16 %v380, %v377
      %v392 = vpack.c.bf16 %v388, %v385
      %v395 = vunpack.c.l.b16 %v391
      %v396 = vunpack.c.h.b16 %v391
      %v397 = vunpack.c.l.b16 %v392
      %v398 = vunpack.c.h.b16 %v392
      %v399 = vpack.c.b16 %v395, %v395
      %v400 = vpack.c.b16 %v396, %v396
      %v401 = vpack.c.b16 %v397, %v397
      %v402 = vpack.c.b16 %v398, %v398
      %vm407 = vcmask 125952
      %408 = vst.msk [vmem:[%s262] sm:$0xf] %vm407, %v399
      %409 = vst.msk [vmem:[%s262 + $0x4] sm:$0xf] %vm407, %v400
      %410 = vst.msk [vmem:[%s262 + $0x8] sm:$0xf] %vm407, %v401
      %411 = vst.msk [vmem:[%s262 + $0xc] sm:$0xf] %vm407, %v402
      %s412 = smul.u32 4, %s19
      %p413 = scmp.lt.s32.totalorder %s20, 1
      %s414 = scalar_select %p413, %s20, 1
      %p415 = scmp.lt.s32.totalorder %s412, 3
      %s416 = scalar_select %p415, %s412, 3
      %p417 = scmp.lt.s32.totalorder %s21, 0
      %s418 = scalar_select %p417, %s21, 0
      %s419 = sadd.s32 %s418, %s416
      %s420 = smul.addr %s414, 4
      %s421 = sadd.s32 %s419, %s420
      %s422 = smul.addr %s421, 4
      %s423 = scalar_lea.vmem %s3, %s422
      // Predicated region
      $region33: #{tpu_custom_call.1} parent=31 // pred_check
        %p424 = pneg %p135
      $region34: #{tpu_custom_call.1} parent=31 // pred_check_branch
        %426 = sbr.rel (%p424) target = $region36
      $region35: #{tpu_custom_call.1} parent=31 // pred_region
        %s427 = smul.u32 4, %s19
      $region36: #{tpu_custom_call.1} parent=31 // pred_fallthru
        _
    $region32: #{tpu_custom_call.1} parent=5 // pred_fallthru
      _
    %p428 = scmp.le.s32.totalorder 2, %s9
    // Predicated region
    $region37: #{tpu_custom_call.1} parent=5 // pred_check
      %p429 = pneg %p428
    $region38: #{tpu_custom_call.1} parent=5 // pred_check_branch
      %431 = sbr.rel (%p429) target = $region40
    $region39: #{tpu_custom_call.1} parent=5 // pred_region
      %s432 = ssub.s32 %s9, 2
      // Predicated region
      $region41: #{tpu_custom_call.1} parent=39 // pred_check
        %p433 = pneg %p141
      $region42: #{tpu_custom_call.1} parent=39 // pred_check_branch
        %435 = sbr.rel (%p433) target = $region44
      $region43: #{tpu_custom_call.1} parent=39 // pred_region
        %s436 = smul.u32 4, %s22
        %p437 = scmp.lt.s32.totalorder %s23, 1
        %s438 = scalar_select %p437, %s23, 1
        %p439 = scmp.lt.s32.totalorder %s436, 3
        %s440 = scalar_select %p439, %s436, 3
        %p441 = scmp.lt.s32.totalorder %s24, 0
        %s442 = scalar_select %p441, %s24, 0
        %s443 = sadd.s32 %s442, %s440
        %s444 = smul.addr %s438, 4
        %s445 = sadd.s32 %s443, %s444
        %s446 = smul.addr %s445, 4
        %s447 = scalar_lea.vmem %s3, %s446
      $region44: #{tpu_custom_call.1} parent=39 // pred_fallthru
        _
    $region40: #{tpu_custom_call.1} parent=5 // pred_fallthru
      _
  $region6: #{tpu_custom_call.1} parent=0 // loop_footer
    %s13 = sadd.s32 1, %s9
  $region7: #{tpu_custom_call.1} parent=0 // loop_footer_branch
    %8 = sbr.rel target = $region3
  $region8: #{tpu_custom_call.1} parent=0 // loop_exit
    _

</llo_original>
